<compile_context>
chip_gen: v7x
topology: tpu7x:2x2x1
jax: 0.10.0
libtpu: 0.0.40
codegen_flags: <defaults>
</compile_context>

<pallas_src>
import functools
import math

import jax
import jax.numpy as jnp
from jax.experimental import pallas as pl
from jax.experimental.pallas import tpu as pltpu


def _wavenet_kernel(p_ref, x_ref, out_ref, *, layers, k):
    """One (Bt, T_pad) batch block of the whole WaveNet stack.

    p_ref (scalar-prefetch SMEM, 1-D f32) layout:
      [0 : layers*k)                 effective tap weights, row-major (layer, tap)
      [layers*k : layers*k+layers)   effective biases per layer
      [layers*k+layers]              final 1x1 weight
      [layers*k+layers+1]            final 1x1 bias
    Only lanes [0, L_out) of the output are valid; the wrapper slices them out.
    """
    x = x_ref[...]                                   # (Bt, Tp) f32 in VMEM
    Tp = x.shape[1]
    nw = layers * k
    fw = p_ref[nw + layers]
    fb = p_ref[nw + layers + 1]

    def shifted(v, s):
        # shifted(v, s)[:, t] == v[:, (t + s) % Tp].  The circular wrap never
        # reaches the valid [0, L_out) output window (receptive-field math in
        # the wrapper), so wrapped lanes are harmless garbage in the padded tail.
        if s == 0:
            return v
        return pltpu.roll(v, Tp - s, axis=1)         # XLU rotate; axis must be >= 0

    # ---- layer 0 (dilation 1); skip 1x1 conv already folded into taps/bias ----
    cur = x * p_ref[0] + p_ref[nw + 0]               # bias fused into first tap
    for j in range(1, k):
        cur = cur + p_ref[j] * shifted(x, j)

    # ---- residual dilated stack; final 1x1 conv folded into last iteration ----
    # Taps are consumed as they are produced; the last tap doubles as the
    # residual source, so only ~3 (Bt, Tp) values stay live at any time.
    for i in range(1, layers):
        d = 2 ** i
        z = cur * p_ref[i * k] + p_ref[nw + i]
        if k == 1:
            res = cur
        else:
            res = shifted(cur, (k - 1) * d)          # last tap == residual source
            for j in range(1, k - 1):
                z = z + p_ref[i * k + j] * shifted(cur, j * d)
            z = z + p_ref[i * k + (k - 1)] * res
        new = jnp.maximum(z, 0.0) + res              # relu + residual (same shift)
        cur = fw * new + fb if i == layers - 1 else new

    if layers == 1:                                  # no residual stack at all
        cur = fw * cur + fb
    out_ref[...] = cur[:, :out_ref.shape[1]]


def conditional_wavenet_forward(x, params, *, layers, k, channels):
    """x: (B, n_cond+1, 1, T); implements the n_cond == 0 path of the torch forward."""
    assert x.shape[1] == 1 and x.shape[2] == 1
    B, T = x.shape[0], x.shape[-1]
    rf = (k - 1) * (2 ** layers - 1)                 # receptive field - 1
    L_out = T - rf
    assert L_out > 0                                 # also keeps the rolls wrap-safe

    # ---- fold Conv1d(1,C,k,d) -> Conv1d(C,1,1) into effective k-tap weights ----
    def fold(w, b, w2, b2):                          # w (C,k), b (C,), w2 (C,), b2 ()
        if channels > 1:
            return w2 @ w, b2 + jnp.dot(w2, b)
        return w[0], b[0]

    w0, b0 = fold(params['wf'], params['bf'], params['wf2'], params['bf2'][0])
    w0 = w0.at[k - 1].add(params['skw'][0])          # fold skip 1x1 conv (offset k-1)
    b0 = b0 + params['skb'][0]
    w_all, b_all = [w0], [b0]
    for i in range(layers - 1):
        wi, bi = fold(params['wd'][i].reshape(channels, k), params['bd'][i],
                      params['wd2'][i], params['bd2'][i])
        w_all.append(wi)
        b_all.append(bi)
    packed = jnp.concatenate([jnp.stack(w_all).reshape(-1),
                              jnp.stack(b_all),
                              params['fw'], params['fb']]).astype(jnp.float32)

    # ---- lane-dense padded shapes; output padded only to round_up(L_out,128) ----
    T_pad = ((T + 127) // 128) * 128
    Lo_pad = ((L_out + 127) // 128) * 128

    # ---- batch-tile sizing against a conservative (v7x 64 MiB VMEM) budget -----
    # per batch row: ~2x in + 2x out pipeline buffers + ~8 live (row, T_pad) temps
    vmem_budget = 40 * 1024 * 1024
    bytes_per_row = 12 * T_pad * 4
    bt_cap = max(8, (vmem_budget // bytes_per_row) // 8 * 8)
    B8 = ((B + 7) // 8) * 8
    Bt = int(min(512, bt_cap, B8))
    if B8 // Bt < 2 and B8 >= 16:                    # keep >=2 grid steps (v7x: 2 TCs)
        Bt = max(8, ((B8 // 2) + 7) // 8 * 8)
    B_pad = ((B + Bt - 1) // Bt) * Bt
    # TODO(synk): for very long T (or B < 16) also tile the time axis with a
    # (k-1)*(2^layers-1) halo so the footprint stays bounded and both v7x cores
    # get work even at tiny batch.

    x2d = x[:, 0, 0, :].astype(jnp.float32)
    if B != B_pad or T != T_pad:                     # skip the pad pass when aligned
        x2d = jnp.zeros((B_pad, T_pad), jnp.float32).at[:B, :T].set(x2d)

    vmem_limit = int(min(56 * 1024 * 1024,
                         max(16 * 1024 * 1024,
                             Bt * (2 * T_pad + 2 * Lo_pad + 8 * T_pad) * 4)))

    kernel = functools.partial(_wavenet_kernel, layers=layers, k=k)
    out_full = pl.pallas_call(
        kernel,
        out_shape=jax.ShapeDtypeStruct((B_pad, Lo_pad), jnp.float32),
        grid_spec=pltpu.PrefetchScalarGridSpec(
            num_scalar_prefetch=1,                   # params -> SMEM once, pre-grid
            grid=(B_pad // Bt,),
            in_specs=[pl.BlockSpec((Bt, T_pad), lambda i, p: (i, 0))],
            out_specs=pl.BlockSpec((Bt, Lo_pad), lambda i, p: (i, 0)),
        ),
        compiler_params=pltpu.CompilerParams(
            dimension_semantics=("parallel",),       # batch tiles split across TCs
            vmem_limit_bytes=vmem_limit),
    )(packed, x2d)
    return out_full[:B, :L_out][:, None, :]          # (B, 1, L_out)


def init_params(key, layers, k, channels):
    """Deterministic synthetic init.  Conv weights use the paper's
    N(0, sqrt(2/(C*k))) init; biases / unconstrained convs get small normals."""
    std = math.sqrt(2.0 / (channels * k))
    ks = jax.random.split(key, 12)
    return {
        'wf':  std * jax.random.normal(ks[0], (channels, k), jnp.float32),
        'bf':  0.1 * jax.random.normal(ks[1], (channels,), jnp.float32),
        'wf2': std * jax.random.normal(ks[2], (channels,), jnp.float32),
        'bf2': 0.1 * jax.random.normal(ks[3], (1,), jnp.float32),
        'skw': jax.random.normal(ks[4], (1,), jnp.float32),
        'skb': 0.1 * jax.random.normal(ks[5], (1,), jnp.float32),
        'wd':  std * jax.random.normal(ks[6], (layers - 1, channels * k), jnp.float32),
        'bd':  0.1 * jax.random.normal(ks[7], (layers - 1, channels), jnp.float32),
        'wd2': std * jax.random.normal(ks[8], (layers - 1, channels), jnp.float32),
        'bd2': 0.1 * jax.random.normal(ks[9], (layers - 1,), jnp.float32),
        'fw':  jax.random.normal(ks[10], (1,), jnp.float32),
        'fb':  0.1 * jax.random.normal(ks[11], (1,), jnp.float32),
    }


def reference_forward(x, params, *, layers, k, channels):
    """Pure-JAX mirror of the torch forward (lax conv), used as a check."""
    def conv1d(sig, w, b, dilation):                 # sig (B,Cin,L), w (Co,Ci,k)
        y = jax.lax.conv_general_dilated(
            sig, w, window_strides=(1,), padding='VALID',
            rhs_dilation=(dilation,),
            dimension_numbers=('NCH', 'OIH', 'NCH'))
        return y + b[None, :, None]

    dil = [2 ** i for i in range(layers)]
    x0 = x[:, 0, :, :]
    h = conv1d(x0, params['wf'].reshape(channels, 1, k), params['bf'], dil[0])
    if channels > 1:
        h = conv1d(h, params['wf2'].reshape(1, channels, 1), params['bf2'], 1)
    skip = conv1d(x0, params['skw'].reshape(1, 1, 1), params['skb'], 1)
    cur = h + skip[:, :, -h.shape[2]:]
    for i in range(layers - 1):
        wd = params['wd'][i].reshape(channels, 1, k)
        h = conv1d(cur, wd, params['bd'][i], dil[i + 1])
        if channels > 1:
            h = conv1d(h, params['wd2'][i].reshape(1, channels, 1),
                       params['bd2'][i:i + 1], 1)
        h = jnp.maximum(h, 0.0)
        cur = h + cur[:, :, -h.shape[2]:]
    return conv1d(cur, params['fw'].reshape(1, 1, 1), params['fb'], 1)


if __name__ == "__main__":
    layers, k, channels = 3, 3, 4        # dilations 1, 2, 4
    B, T = 2, 64
    L_out = T - (k - 1) * (2 ** layers - 1)

    key = jax.random.PRNGKey(0)
    kp, kx = jax.random.split(key)
    params = init_params(kp, layers, k, channels)
    # torch input layout: (B, number_of_conditionals+1, 1, T)
    x = jax.random.normal(kx, (B, 1, 1, T), jnp.float32)

    # TODO(synk): number_of_conditionals > 0 path not implemented (the torch forward
    # itself only indexes channel 0 before overwriting x, so only n_cond==0 is valid).
    out = conditional_wavenet_forward(x, params, layers=layers, k=k,
                                      channels=channels)
    out = jax.block_until_ready(out)

    ref = reference_forward(x, params, layers=layers, k=k, channels=channels)
    assert out.shape == (B, 1, L_out), out.shape
    assert out.dtype == jnp.float32
    assert jnp.allclose(out, ref, atol=1e-4, rtol=1e-4), \
        float(jnp.max(jnp.abs(out - ref)))
    print("KERNEL_OK")
</pallas_src>

<mosaic_0001>
module attributes {stable_mosaic.version = 11 : i64} {
  func.func @_wavenet_kernel(%arg0: i32, %arg1: memref<14xf32, #tpu.memory_space<smem>>, %arg2: memref<8x128xf32, #tpu.memory_space<vmem>>, %arg3: memref<8x128xf32, #tpu.memory_space<vmem>>) attributes {dimension_semantics = [#tpu.dimension_semantics<parallel>], iteration_bounds = array<i64: 1>, scalar_prefetch = 1 : i64, scratch_operands = 0 : i64, tpu.core_type = #tpu.core_type<tc>, window_params = [{transform_indices = @transform_0, window_bounds = array<i64: 8, 128>}, {transform_indices = @transform_1, window_bounds = array<i64: 8, 128>}]} {
    %c0 = arith.constant 0 : index
    %c0_0 = arith.constant 0 : index
    %0 = vector.load %arg2[%c0, %c0_0] : memref<8x128xf32, #tpu.memory_space<vmem>>, vector<8x128xf32>
    %c12 = arith.constant 12 : index
    %1 = memref.load %arg1[%c12] : memref<14xf32, #tpu.memory_space<smem>>
    %c13 = arith.constant 13 : index
    %2 = memref.load %arg1[%c13] : memref<14xf32, #tpu.memory_space<smem>>
    %c0_1 = arith.constant 0 : index
    %3 = memref.load %arg1[%c0_1] : memref<14xf32, #tpu.memory_space<smem>>
    %4 = vector.broadcast %3 : f32 to vector<8x128xf32>
    %5 = arith.mulf %0, %4 : vector<8x128xf32>
    %c9 = arith.constant 9 : index
    %6 = memref.load %arg1[%c9] : memref<14xf32, #tpu.memory_space<smem>>
    %7 = vector.broadcast %6 : f32 to vector<8x128xf32>
    %8 = arith.addf %5, %7 : vector<8x128xf32>
    %c1 = arith.constant 1 : index
    %9 = memref.load %arg1[%c1] : memref<14xf32, #tpu.memory_space<smem>>
    %c127_i32 = arith.constant 127 : i32
    %10 = tpu.dynamic_rotate %0 by %c127_i32 dim 1 : vector<8x128xf32>, i32 -> vector<8x128xf32>
    %11 = vector.broadcast %9 : f32 to vector<8x128xf32>
    %12 = arith.mulf %11, %10 : vector<8x128xf32>
    %13 = arith.addf %8, %12 : vector<8x128xf32>
    %c2 = arith.constant 2 : index
    %14 = memref.load %arg1[%c2] : memref<14xf32, #tpu.memory_space<smem>>
    %c126_i32 = arith.constant 126 : i32
    %15 = tpu.dynamic_rotate %0 by %c126_i32 dim 1 : vector<8x128xf32>, i32 -> vector<8x128xf32>
    %16 = vector.broadcast %14 : f32 to vector<8x128xf32>
    %17 = arith.mulf %16, %15 : vector<8x128xf32>
    %18 = arith.addf %13, %17 : vector<8x128xf32>
    %c3 = arith.constant 3 : index
    %19 = memref.load %arg1[%c3] : memref<14xf32, #tpu.memory_space<smem>>
    %20 = vector.broadcast %19 : f32 to vector<8x128xf32>
    %21 = arith.mulf %18, %20 : vector<8x128xf32>
    %c10 = arith.constant 10 : index
    %22 = memref.load %arg1[%c10] : memref<14xf32, #tpu.memory_space<smem>>
    %23 = vector.broadcast %22 : f32 to vector<8x128xf32>
    %24 = arith.addf %21, %23 : vector<8x128xf32>
    %c124_i32 = arith.constant 124 : i32
    %25 = tpu.dynamic_rotate %18 by %c124_i32 dim 1 : vector<8x128xf32>, i32 -> vector<8x128xf32>
    %c4 = arith.constant 4 : index
    %26 = memref.load %arg1[%c4] : memref<14xf32, #tpu.memory_space<smem>>
    %c126_i32_2 = arith.constant 126 : i32
    %27 = tpu.dynamic_rotate %18 by %c126_i32_2 dim 1 : vector<8x128xf32>, i32 -> vector<8x128xf32>
    %28 = vector.broadcast %26 : f32 to vector<8x128xf32>
    %29 = arith.mulf %28, %27 : vector<8x128xf32>
    %30 = arith.addf %24, %29 : vector<8x128xf32>
    %c5 = arith.constant 5 : index
    %31 = memref.load %arg1[%c5] : memref<14xf32, #tpu.memory_space<smem>>
    %32 = vector.broadcast %31 : f32 to vector<8x128xf32>
    %33 = arith.mulf %32, %25 : vector<8x128xf32>
    %34 = arith.addf %30, %33 : vector<8x128xf32>
    %cst = arith.constant 0.000000e+00 : f32
    %35 = vector.broadcast %cst : f32 to vector<8x128xf32>
    %36 = arith.maximumf %34, %35 : vector<8x128xf32>
    %37 = arith.addf %36, %25 : vector<8x128xf32>
    %c6 = arith.constant 6 : index
    %38 = memref.load %arg1[%c6] : memref<14xf32, #tpu.memory_space<smem>>
    %39 = vector.broadcast %38 : f32 to vector<8x128xf32>
    %40 = arith.mulf %37, %39 : vector<8x128xf32>
    %c11 = arith.constant 11 : index
    %41 = memref.load %arg1[%c11] : memref<14xf32, #tpu.memory_space<smem>>
    %42 = vector.broadcast %41 : f32 to vector<8x128xf32>
    %43 = arith.addf %40, %42 : vector<8x128xf32>
    %c120_i32 = arith.constant 120 : i32
    %44 = tpu.dynamic_rotate %37 by %c120_i32 dim 1 : vector<8x128xf32>, i32 -> vector<8x128xf32>
    %c7 = arith.constant 7 : index
    %45 = memref.load %arg1[%c7] : memref<14xf32, #tpu.memory_space<smem>>
    %c124_i32_3 = arith.constant 124 : i32
    %46 = tpu.dynamic_rotate %37 by %c124_i32_3 dim 1 : vector<8x128xf32>, i32 -> vector<8x128xf32>
    %47 = vector.broadcast %45 : f32 to vector<8x128xf32>
    %48 = arith.mulf %47, %46 : vector<8x128xf32>
    %49 = arith.addf %43, %48 : vector<8x128xf32>
    %c8 = arith.constant 8 : index
    %50 = memref.load %arg1[%c8] : memref<14xf32, #tpu.memory_space<smem>>
    %51 = vector.broadcast %50 : f32 to vector<8x128xf32>
    %52 = arith.mulf %51, %44 : vector<8x128xf32>
    %53 = arith.addf %49, %52 : vector<8x128xf32>
    %cst_4 = arith.constant 0.000000e+00 : f32
    %54 = vector.broadcast %cst_4 : f32 to vector<8x128xf32>
    %55 = arith.maximumf %53, %54 : vector<8x128xf32>
    %56 = arith.addf %55, %44 : vector<8x128xf32>
    %57 = vector.broadcast %1 : f32 to vector<8x128xf32>
    %58 = arith.mulf %57, %56 : vector<8x128xf32>
    %59 = vector.broadcast %2 : f32 to vector<8x128xf32>
    %60 = arith.addf %58, %59 : vector<8x128xf32>
    %c0_5 = arith.constant 0 : index
    %c0_6 = arith.constant 0 : index
    %61 = vector.load %arg3[%c0_5, %c0_6] : memref<8x128xf32, #tpu.memory_space<vmem>>, vector<8x128xf32>
    tpu.vector_store %arg3[%c0_5, %c0_6], %60 {strides = array<i32>} : memref<8x128xf32, #tpu.memory_space<vmem>>, vector<8x128xf32>,
    return
  }
  func.func @transform_0(%arg0: i32, %arg1: memref<14xf32, #tpu.memory_space<smem>>) -> (i32, i32) {
    %c0_i32 = arith.constant 0 : i32
    %c0_i32_0 = arith.constant 0 : i32
    return %arg0, %c0_i32 : i32, i32
  }
  func.func @transform_1(%arg0: i32, %arg1: memref<14xf32, #tpu.memory_space<smem>>) -> (i32, i32) {
    %c0_i32 = arith.constant 0 : i32
    %c0_i32_0 = arith.constant 0 : i32
    return %arg0, %c0_i32 : i32, i32
  }
}

</mosaic_0001>

<llo_original>
// kernel: tpu_custom_call.1
$region0: #{tpu_custom_call.1}
  #allocation0 [shape = 'u32[]', space=smem, size = 0x4, offset = 0x4, fixed_abs, tag = 'smem constant byte address 0x4 - core index']
  #allocation1 [shape = 'u32[144,128]{1,0:T(1,128)}', space=vmem, size = 0x12000, scoped, tag = 'internal scratch']
  #allocation2 [shape = 's32[1]{0}', space=sflag, size = 0x4, scoped, tag = 'scoped memory for tpu_custom_call.1']
  #allocation3 [shape = 'u8[512]{0}', space=smem, size = 0x200, scoped, tag = 'prefetched SMEM operand 0']
  %s0 = inlined_call_operand.hbm [shape: f32[14], index: 0, kind: input, shape index: {}]
  %s1 = inlined_call_operand.hbm [shape: f32[8,128], index: 1, kind: input, shape index: {}]
  %s2 = inlined_call_operand.hbm [shape: f32[8,128], index: 2, kind: output, shape index: {}]
  %s3 = sld [smem:[#allocation0]]
  $region18: #{tpu_custom_call.1} parent=0
    _
  %s5 = ssub.s32 1, %s3
  %s6 = scalar_select 0, %s5, %s3
  %8 = dma.hbm_to_smem %s0, 16, [#allocation3], [#allocation2]
  %9 = dma.done [#allocation2], 16
  %10 = sfence
  $region1: #{tpu_custom_call.1} parent=0
    #allocation4 [shape = 'u8[4096]{0}', space=vmem, size = 0x1000, scoped, tag = 'input window, operand 1, single buffered']
    #allocation5 [shape = 's32[1]{0}', space=sflag, size = 0x4, scoped, tag = 'scoped memory for tpu_custom_call.1']
    #allocation6 [shape = 's32[1]{0}', space=sflag, size = 0x4, scoped, tag = 'scoped memory for tpu_custom_call.1']
    #allocation7 [shape = 'u8[4096]{0}', space=vmem, size = 0x1000, scoped, tag = 'output window, operand 0, single buffered']
    %11 = vsyncpa [#allocation5], 0
    %12 = vsyncpa [#allocation6], 0
    // Predicated region
    $region2: #{tpu_custom_call.1} parent=1 // pred_check
      _
    $region3: #{tpu_custom_call.1} parent=1 // pred_check_branch
      %14 = sbr.rel (0) target = $region5
    $region4: #{tpu_custom_call.1} parent=1 // pred_region
      %s16 = ssub.s32 128, 128
      %17 = vsyncadd [#allocation5], %s16
      %s19 = sshll.u32 [#allocation4], 4
      %s20 = int_to_ptr.vmem [resolvable:$true] %s19
      %22 = dma.hbm_to_vmem [thread:$0]  %s1, 128, %s20, [#allocation5]
    $region5: #{tpu_custom_call.1} parent=1 // pred_fallthru
      _
    // Predicated region
    $region6: #{tpu_custom_call.1} parent=1 // pred_check
      _
    $region7: #{tpu_custom_call.1} parent=1 // pred_check_branch
      %24 = sbr.rel (0) target = $region9
    $region8: #{tpu_custom_call.1} parent=1 // pred_region
      %25 = dma.done [#allocation5], 128
    $region9: #{tpu_custom_call.1} parent=1 // pred_fallthru
      _
    %v26 = vld [vmem:[#allocation4] sm:$0xff]
    %s27 = sld [smem:[#allocation3 + $0xc]]
    %s28 = sld [smem:[#allocation3 + $0xd]]
    %s29 = sld [smem:[#allocation3]]
    %v30 = vstv %s29
    %v31 = vmul.f32 %v26, %v30
    %s32 = sld [smem:[#allocation3 + $0x9]]
    %v33 = vstv %s32
    %v34 = vadd.f32 %v31, %v33
    %s35 = sld [smem:[#allocation3 + $0x1]]
    %36 = vrot.lane.b32.xlu0 %v26, 127
    %v37 = vpop.permute.xlu0 %36
    %v38 = vstv %s35
    %v39 = vmul.f32 %v38, %v37
    %v40 = vadd.f32 %v34, %v39
    %s41 = sld [smem:[#allocation3 + $0x2]]
    %42 = vrot.lane.b32.xlu0 %v26, 126
    %v43 = vpop.permute.xlu0 %42
    %v44 = vstv %s41
    %v45 = vmul.f32 %v44, %v43
    %v46 = vadd.f32 %v40, %v45
    %s47 = sld [smem:[#allocation3 + $0x3]]
    %v48 = vstv %s47
    %v49 = vmul.f32 %v46, %v48
    %s50 = sld [smem:[#allocation3 + $0xa]]
    %v51 = vstv %s50
    %v52 = vadd.f32 %v49, %v51
    %53 = vrot.lane.b32.xlu0 %v46, 124
    %v54 = vpop.permute.xlu0 %53
    %s55 = sld [smem:[#allocation3 + $0x4]]
    %56 = vrot.lane.b32.xlu0 %v46, 126
    %v57 = vpop.permute.xlu0 %56
    %v58 = vstv %s55
    %v59 = vmul.f32 %v58, %v57
    %v60 = vadd.f32 %v52, %v59
    %s61 = sld [smem:[#allocation3 + $0x5]]
    %v62 = vstv %s61
    %v63 = vmul.f32 %v62, %v54
    %v64 = vadd.f32 %v60, %v63
    %v65 = vmax.f32 %v64, 0.0
    %v66 = vadd.f32 %v65, %v54
    %s67 = sld [smem:[#allocation3 + $0x6]]
    %v68 = vstv %s67
    %v69 = vmul.f32 %v66, %v68
    %s70 = sld [smem:[#allocation3 + $0xb]]
    %v71 = vstv %s70
    %v72 = vadd.f32 %v69, %v71
    %73 = vrot.lane.b32.xlu0 %v66, 120
    %v74 = vpop.permute.xlu0 %73
    %s75 = sld [smem:[#allocation3 + $0x7]]
    %76 = vrot.lane.b32.xlu0 %v66, 124
    %v77 = vpop.permute.xlu0 %76
    %v78 = vstv %s75
    %v79 = vmul.f32 %v78, %v77
    %v80 = vadd.f32 %v72, %v79
    %s81 = sld [smem:[#allocation3 + $0x8]]
    %v82 = vstv %s81
    %v83 = vmul.f32 %v82, %v74
    %v84 = vadd.f32 %v80, %v83
    %v85 = vmax.f32 %v84, 0.0
    %v86 = vadd.f32 %v85, %v74
    %v87 = vstv %s27
    %v88 = vmul.f32 %v87, %v86
    %v89 = vstv %s28
    %v90 = vadd.f32 %v88, %v89
    %91 = vst [vmem:[#allocation7] sm:$0xff] %v90
    // Predicated region
    $region10: #{tpu_custom_call.1} parent=1 // pred_check
      _
    $region11: #{tpu_custom_call.1} parent=1 // pred_check_branch
      %93 = sbr.rel (0) target = $region13
    $region12: #{tpu_custom_call.1} parent=1 // pred_region
      %s95 = ssub.s32 128, 128
      %96 = vsyncadd [#allocation6], %s95
      %s98 = sshll.u32 [#allocation7], 4
      %s99 = int_to_ptr.vmem [resolvable:$true] %s98
      %101 = dma.vmem_to_hbm [thread:$0]  %s99, 128, %s2, [#allocation6]
    $region13: #{tpu_custom_call.1} parent=1 // pred_fallthru
      _
    // Predicated region
    $region14: #{tpu_custom_call.1} parent=1 // pred_check
      _
    $region15: #{tpu_custom_call.1} parent=1 // pred_check_branch
      %103 = sbr.rel (0) target = $region17
    $region16: #{tpu_custom_call.1} parent=1 // pred_region
      %104 = dma.done [#allocation6], 128
    $region17: #{tpu_custom_call.1} parent=1 // pred_fallthru
      _
    %105 = vsyncpa [#allocation5], 1
    %106 = vsyncpa [#allocation6], 1

</llo_original>
